<compile_context>
chip_gen: v7x
topology: tpu7x:2x2x1
jax: 0.10.0
libtpu: 0.0.40
codegen_flags: <defaults>
</compile_context>

<pallas_src>
import math

import jax
import jax.numpy as jnp
from jax.experimental import pallas as pl
from jax.experimental.pallas import tpu as pltpu


def _round_up(x, m):
    return ((x + m - 1) // m) * m


def _cdiv(a, b):
    return (a + b - 1) // b


def _patch_embed_kernel(x_ref, w_ref, b_ref, o_ref):
    # x_ref: (tm, Kp), w_ref: (Kp, Dp), b_ref: (1, Dp) f32, o_ref: (tm, Dp)
    acc = jnp.dot(x_ref[...], w_ref[...], preferred_element_type=jnp.float32)
    o_ref[...] = (acc + b_ref[...]).astype(o_ref.dtype)


def patch_embedding(x, weight, bias, patch_length, *,
                    compute_dtype=jnp.bfloat16, out_dtype=None):
    """x: (B, 1, L); weight: (d_model, patch_length); bias: (d_model,)."""
    B, C, L = x.shape
    assert C == 1, "PatchEmbedding squeezes channel dim 1 (expects size 1)"
    assert L >= patch_length
    P = patch_length
    D = weight.shape[0]
    N = L // P                 # torch unfold silently drops a trailing remainder
    M = B * N
    out_dtype = x.dtype if out_dtype is None else out_dtype

    # Glue: unfold + squeeze == reshape for non-overlapping patches (step == size).
    x2d = x[..., :N * P].reshape(M, P)

    # ---- Lane density via patch packing (no D/M padding, no post-slice). ----
    # Pack `pk` consecutive patches per row so both the contraction dim (pk*P)
    # and the output dim (pk*D) become multiples of 128.  The weight becomes
    # block-diagonal kron(I_pk, W^T); the packed output reshapes back to (M, D)
    # for free because consecutive rows stay contiguous.
    pk_p = 128 // math.gcd(128, P)
    pk_d = 128 // math.gcd(128, D)
    pk = math.lcm(pk_p, pk_d)
    if pk > 1 and (pk > 16 or M % pk != 0):
        pk = 1                 # fall back: unpadded tiles, masked output stores

    w_t = weight.T.astype(compute_dtype)                        # (P, D)
    if pk > 1:
        x_p = x2d.reshape(M // pk, pk * P).astype(compute_dtype)
        w_p = jnp.kron(jnp.eye(pk, dtype=compute_dtype), w_t)   # (pk*P, pk*D)
        b_p = jnp.tile(bias.astype(jnp.float32), pk).reshape(1, pk * D)
    else:
        x_p = x2d.astype(compute_dtype)
        w_p = w_t
        b_p = bias.astype(jnp.float32).reshape(1, D)

    Mr, Kp = x_p.shape
    Dp = w_p.shape[1]

    # ---- Tile-size selection (budget incl. weight/bias; v7x TC balance). ----
    in_bytes = jnp.dtype(compute_dtype).itemsize
    out_bytes = jnp.dtype(out_dtype).itemsize
    kp_lane = _round_up(Kp, 128)
    dp_lane = _round_up(Dp, 128)
    row_bytes = in_bytes * kp_lane + out_bytes * dp_lane
    # Double-buffered weight + bias blocks (constant index_map, but budgeted).
    wb_bytes = 2 * (_round_up(Kp, 8) * dp_lane * in_bytes + dp_lane * 4)
    budget = 8 * 1024 * 1024
    tm = max(budget - wb_bytes, 2 * 1024 * 1024) // (2 * row_bytes)
    tm = min(tm, 1024)                                   # roofline saturates ~1K rows
    if Mr >= 64:
        tm = min(tm, _round_up(_cdiv(Mr, 8), 8))         # >= 8 steps: balance v7x 2 TCs
    tm = min(tm, Mr)
    if Mr >= 8:
        tm = max(8, (tm // 8) * 8)                       # sublane-aligned
    else:
        tm = max(Mr, 1)                                  # block == full dim is legal

    grid = (_cdiv(Mr, tm),)     # ragged last tile masked by Pallas (no jnp.pad pass)

    footprint = 2 * tm * row_bytes + wb_bytes
    vmem_limit = int(min(32 * 1024 * 1024, max(4 * 1024 * 1024, 2 * footprint)))

    cost = pl.CostEstimate(
        flops=2 * Mr * Kp * Dp,
        transcendentals=0,
        bytes_accessed=(Mr * Kp * in_bytes + Kp * Dp * in_bytes
                        + Dp * 4 + Mr * Dp * out_bytes),
    )

    out_p = pl.pallas_call(
        _patch_embed_kernel,
        out_shape=jax.ShapeDtypeStruct((Mr, Dp), out_dtype),
        grid=grid,
        in_specs=[
            pl.BlockSpec((tm, Kp), lambda i: (i, 0)),    # row tiles (pipelined)
            pl.BlockSpec((Kp, Dp), lambda i: (0, 0)),    # weight: VMEM-resident
            pl.BlockSpec((1, Dp), lambda i: (0, 0)),     # bias: VMEM-resident
        ],
        out_specs=pl.BlockSpec((tm, Dp), lambda i: (i, 0)),
        compiler_params=pltpu.CompilerParams(
            dimension_semantics=("parallel",),           # v7x: shard rows across 2 TCs
            vmem_limit_bytes=vmem_limit,
        ),
        cost_estimate=cost,
    )(x_p, w_p, b_p)

    # Packed rows are contiguous: (M//pk, pk*D) -> (B, N, D) is a free reshape.
    return out_p.reshape(B, N, D)


if __name__ == "__main__":
    # Small, deterministic configuration.
    B, L = 2, 64
    patch_length = 16
    d_model = 32

    key = jax.random.PRNGKey(0)
    kx, kw, kb = jax.random.split(key, 3)

    # Input signal: (B, 1, L), matching the PyTorch NCL-style layout.
    x = jax.random.normal(kx, (B, 1, L), dtype=jnp.float32)

    # nn.Linear(patch_length, d_model) init: U(-1/sqrt(P), 1/sqrt(P)).
    bound = 1.0 / (patch_length ** 0.5)
    weight = jax.random.uniform(kw, (d_model, patch_length),
                                minval=-bound, maxval=bound, dtype=jnp.float32)
    bias = jax.random.uniform(kb, (d_model,),
                              minval=-bound, maxval=bound, dtype=jnp.float32)

    out = patch_embedding(x, weight, bias, patch_length)
    out = jax.block_until_ready(out)

    N = L // patch_length
    patches = x.reshape(B, N, patch_length)

    # Tight check: reference with the same bf16 input rounding the kernel uses.
    ref_bf16 = (patches.astype(jnp.bfloat16).astype(jnp.float32)
                @ weight.astype(jnp.bfloat16).astype(jnp.float32).T + bias)
    # Loose check: pure f32 nn.Linear reference (bf16 input-rounding tolerance).
    ref_f32 = patches @ weight.T + bias

    assert out.shape == (B, N, d_model)
    assert out.dtype == x.dtype
    assert jnp.allclose(out, ref_bf16, atol=1e-4, rtol=1e-4)
    assert jnp.allclose(out, ref_f32, atol=3e-2, rtol=3e-2)

    print("KERNEL_OK")
</pallas_src>

<mosaic_0001>
module attributes {stable_mosaic.version = 11 : i64} {
  func.func @_patch_embed_kernel(%arg0: i32, %arg1: memref<1x128xbf16, #tpu.memory_space<vmem>>, %arg2: memref<128x256xbf16, #tpu.memory_space<vmem>>, %arg3: memref<1x256xf32, #tpu.memory_space<vmem>>, %arg4: memref<1x256xf32, #tpu.memory_space<vmem>>) attributes {dimension_semantics = [#tpu.dimension_semantics<parallel>], iteration_bounds = array<i64: 1>, scalar_prefetch = 0 : i64, scratch_operands = 0 : i64, tpu.core_type = #tpu.core_type<tc>, window_params = [{transform_indices = @transform_0, window_bounds = array<i64: 1, 128>}, {pipeline_mode = #tpu.pipeline_mode<synchronous>, transform_indices = @transform_1, window_bounds = array<i64: 128, 256>}, {pipeline_mode = #tpu.pipeline_mode<synchronous>, transform_indices = @transform_2, window_bounds = array<i64: 1, 256>}, {transform_indices = @transform_3, window_bounds = array<i64: 1, 256>}]} {
    %c0 = arith.constant 0 : index
    %c0_0 = arith.constant 0 : index
    %0 = vector.load %arg1[%c0, %c0_0] : memref<1x128xbf16, #tpu.memory_space<vmem>>, vector<1x128xbf16>
    %c0_1 = arith.constant 0 : index
    %c0_2 = arith.constant 0 : index
    %1 = vector.load %arg2[%c0_1, %c0_2] : memref<128x256xbf16, #tpu.memory_space<vmem>>, vector<128x256xbf16>
    %cst = arith.constant dense<0.000000e+00> : vector<1x256xf32>
    %2 = tpu.matmul %0, %1, %cst {dimension_numbers = #tpu.dot_dimension_numbers<[1], [0], [0], [1], [0, 0, 1, 1], [], []>} : vector<1x128xbf16>, vector<128x256xbf16>, vector<1x256xf32> -> vector<1x256xf32>
    %c0_3 = arith.constant 0 : index
    %c0_4 = arith.constant 0 : index
    %3 = vector.load %arg3[%c0_3, %c0_4] : memref<1x256xf32, #tpu.memory_space<vmem>>, vector<1x256xf32>
    %4 = arith.addf %2, %3 : vector<1x256xf32>
    %c0_5 = arith.constant 0 : index
    %c0_6 = arith.constant 0 : index
    %5 = vector.load %arg4[%c0_5, %c0_6] : memref<1x256xf32, #tpu.memory_space<vmem>>, vector<1x256xf32>
    tpu.vector_store %arg4[%c0_5, %c0_6], %4 {strides = array<i32>} : memref<1x256xf32, #tpu.memory_space<vmem>>, vector<1x256xf32>,
    return
  }
  func.func @transform_0(%arg0: i32) -> (i32, i32) {
    %c0_i32 = arith.constant 0 : i32
    %c0_i32_0 = arith.constant 0 : i32
    return %arg0, %c0_i32 : i32, i32
  }
  func.func @transform_1(%arg0: i32) -> (i32, i32) {
    %c0_i32 = arith.constant 0 : i32
    %c0_i32_0 = arith.constant 0 : i32
    %c0_i32_1 = arith.constant 0 : i32
    return %c0_i32, %c0_i32_0 : i32, i32
  }
  func.func @transform_2(%arg0: i32) -> (i32, i32) {
    %c0_i32 = arith.constant 0 : i32
    %c0_i32_0 = arith.constant 0 : i32
    %c0_i32_1 = arith.constant 0 : i32
    return %c0_i32, %c0_i32_0 : i32, i32
  }
  func.func @transform_3(%arg0: i32) -> (i32, i32) {
    %c0_i32 = arith.constant 0 : i32
    %c0_i32_0 = arith.constant 0 : i32
    return %arg0, %c0_i32 : i32, i32
  }
}

</mosaic_0001>

<llo_original>
// kernel: tpu_custom_call.1
$region0: #{tpu_custom_call.1}
  #allocation0 [shape = 'u32[]', space=smem, size = 0x4, offset = 0x4, fixed_abs, tag = 'smem constant byte address 0x4 - core index']
  #allocation1 [shape = 'u32[144,128]{1,0:T(1,128)}', space=vmem, size = 0x12000, scoped, tag = 'internal scratch']
  %s0 = inlined_call_operand.hbm [shape: bf16[1,128], index: 0, kind: input, shape index: {}]
  %s1 = inlined_call_operand.hbm [shape: bf16[128,256], index: 1, kind: input, shape index: {}]
  %s2 = inlined_call_operand.vmem [shape: f32[1,256], index: 2, kind: input, shape index: {}]
  %s3 = inlined_call_operand.hbm [shape: f32[1,256], index: 3, kind: output, shape index: {}]
  %s4 = sld [smem:[#allocation0]]
  $region30: #{tpu_custom_call.1} parent=0
    _
  %s6 = ssub.s32 1, %s4
  %s7 = scalar_select 0, %s6, %s4
  $region1: #{tpu_custom_call.1} parent=0
    #allocation2 [shape = 'u8[512]{0}', space=vmem, size = 0x400, scoped, tag = 'input window, operand 0, single buffered']
    #allocation3 [shape = 's32[1]{0}', space=sflag, size = 0x4, scoped, tag = 'scoped memory for tpu_custom_call.1']
    #allocation4 [shape = 's32[1]{0}', space=sflag, size = 0x4, scoped, tag = 'scoped memory for tpu_custom_call.1']
    #allocation5 [shape = 'u8[65536]{0}', space=vmem, size = 0x10000, scoped, tag = 'input window, operand 1, single buffered']
    #allocation6 [shape = 's32[1]{0}', space=sflag, size = 0x4, scoped, tag = 'scoped memory for tpu_custom_call.1']
    #allocation7 [shape = 'u8[1024]{0}', space=vmem, size = 0x400, scoped, tag = 'output window, operand 0, single buffered']
    %8 = vsyncpa [#allocation3], 0
    %9 = vsyncpa [#allocation6], 0
    %10 = vsyncpa [#allocation4], 0
    // Predicated region
    $region2: #{tpu_custom_call.1} parent=1 // pred_check
      _
    $region3: #{tpu_custom_call.1} parent=1 // pred_check_branch
      %12 = sbr.rel (0) target = $region5
    $region4: #{tpu_custom_call.1} parent=1 // pred_region
      %s14 = ssub.s32 16, 16
      %15 = vsyncadd [#allocation3], %s14
      %s17 = sshll.u32 [#allocation2], 4
      %s18 = int_to_ptr.vmem [resolvable:$true] %s17
      %20 = dma.hbm_to_vmem [thread:$0]  %s0, 16, %s18, [#allocation3]
    $region5: #{tpu_custom_call.1} parent=1 // pred_fallthru
      _
    // Predicated region
    $region6: #{tpu_custom_call.1} parent=1 // pred_check
      _
    $region7: #{tpu_custom_call.1} parent=1 // pred_check_branch
      %22 = sbr.rel (0) target = $region9
    $region8: #{tpu_custom_call.1} parent=1 // pred_region
      %s24 = ssub.s32 2048, 2048
      %25 = vsyncadd [#allocation6], %s24
      %s26 = sshll.u32 [#allocation5], 4
      %s27 = int_to_ptr.vmem [resolvable:$true] %s26
      %32 = dma.hbm_to_vmem [thread:$0]  %s1, 2048, %s27, [#allocation6], 128, 128, 8
    $region9: #{tpu_custom_call.1} parent=1 // pred_fallthru
      _
    // Predicated region
    $region10: #{tpu_custom_call.1} parent=1 // pred_check
      _
    $region11: #{tpu_custom_call.1} parent=1 // pred_check_branch
      %34 = sbr.rel (0) target = $region13
    $region12: #{tpu_custom_call.1} parent=1 // pred_region
      _
    $region13: #{tpu_custom_call.1} parent=1 // pred_fallthru
      _
    // Predicated region
    $region14: #{tpu_custom_call.1} parent=1 // pred_check
      _
    $region15: #{tpu_custom_call.1} parent=1 // pred_check_branch
      %36 = sbr.rel (0) target = $region17
    $region16: #{tpu_custom_call.1} parent=1 // pred_region
      %37 = dma.done [#allocation3], 16
    $region17: #{tpu_custom_call.1} parent=1 // pred_fallthru
      _
    // Predicated region
    $region18: #{tpu_custom_call.1} parent=1 // pred_check
      _
    $region19: #{tpu_custom_call.1} parent=1 // pred_check_branch
      %39 = sbr.rel (0) target = $region21
    $region20: #{tpu_custom_call.1} parent=1 // pred_region
      %40 = dma.done [#allocation6], 2048
    $region21: #{tpu_custom_call.1} parent=1 // pred_fallthru
      _
    %v42 = vld [vmem:[#allocation2] sm:$0x1]
    %v43 = vld [vmem:[#allocation5] sm:$0xff]
    %v44 = vld [vmem:[#allocation5 + $0x8] sm:$0xff]
    %v45 = vld [vmem:[#allocation5 + $0x10] sm:$0xff]
    %v46 = vld [vmem:[#allocation5 + $0x18] sm:$0xff]
    %v47 = vld [vmem:[#allocation5 + $0x20] sm:$0xff]
    %v48 = vld [vmem:[#allocation5 + $0x28] sm:$0xff]
    %v49 = vld [vmem:[#allocation5 + $0x30] sm:$0xff]
    %v50 = vld [vmem:[#allocation5 + $0x38] sm:$0xff]
    %v51 = vld [vmem:[#allocation5 + $0x40] sm:$0xff]
    %v52 = vld [vmem:[#allocation5 + $0x48] sm:$0xff]
    %v53 = vld [vmem:[#allocation5 + $0x50] sm:$0xff]
    %v54 = vld [vmem:[#allocation5 + $0x58] sm:$0xff]
    %v55 = vld [vmem:[#allocation5 + $0x60] sm:$0xff]
    %v56 = vld [vmem:[#allocation5 + $0x68] sm:$0xff]
    %v57 = vld [vmem:[#allocation5 + $0x70] sm:$0xff]
    %v58 = vld [vmem:[#allocation5 + $0x78] sm:$0xff]
    %v59 = vld [vmem:[%s2] sm:$0x3]
    %v76 = vunpack.c.l.b16 %v43
    %v77 = vunpack.c.h.b16 %v43
    %v78 = vunpack.c.l.b16 %v44
    %v79 = vunpack.c.h.b16 %v44
    %v80 = vunpack.c.l.b16 %v45
    %v81 = vunpack.c.h.b16 %v45
    %v82 = vunpack.c.l.b16 %v46
    %v83 = vunpack.c.h.b16 %v46
    %v84 = vunpack.c.l.b16 %v47
    %v85 = vunpack.c.h.b16 %v47
    %v86 = vunpack.c.l.b16 %v48
    %v87 = vunpack.c.h.b16 %v48
    %v88 = vunpack.c.l.b16 %v49
    %v89 = vunpack.c.h.b16 %v49
    %v90 = vunpack.c.l.b16 %v50
    %v91 = vunpack.c.h.b16 %v50
    %v92 = vunpack.c.l.b16 %v51
    %v93 = vunpack.c.h.b16 %v51
    %v94 = vunpack.c.l.b16 %v52
    %v95 = vunpack.c.h.b16 %v52
    %v96 = vunpack.c.l.b16 %v53
    %v97 = vunpack.c.h.b16 %v53
    %v98 = vunpack.c.l.b16 %v54
    %v99 = vunpack.c.h.b16 %v54
    %v100 = vunpack.c.l.b16 %v55
    %v101 = vunpack.c.h.b16 %v55
    %v102 = vunpack.c.l.b16 %v56
    %v103 = vunpack.c.h.b16 %v56
    %v104 = vunpack.c.l.b16 %v57
    %v105 = vunpack.c.h.b16 %v57
    %v106 = vunpack.c.l.b16 %v58
    %v107 = vunpack.c.h.b16 %v58
    %v108 = vpack.c.b16 %v78, %v76
    %v109 = vpack.c.b16 %v79, %v77
    %v110 = vpack.c.b16 %v82, %v80
    %v111 = vpack.c.b16 %v83, %v81
    %v112 = vpack.c.b16 %v86, %v84
    %v113 = vpack.c.b16 %v87, %v85
    %v114 = vpack.c.b16 %v90, %v88
    %v115 = vpack.c.b16 %v91, %v89
    %v116 = vpack.c.b16 %v94, %v92
    %v117 = vpack.c.b16 %v95, %v93
    %v118 = vpack.c.b16 %v98, %v96
    %v119 = vpack.c.b16 %v99, %v97
    %v120 = vpack.c.b16 %v102, %v100
    %v121 = vpack.c.b16 %v103, %v101
    %v122 = vpack.c.b16 %v106, %v104
    %v123 = vpack.c.b16 %v107, %v105
    %v141 = vlaneseq
    %v142 = vshrl.u32 %v141, 7
    %v143 = vsub.s32 0, %v142
    %v144 = vrot.slane %v59, %v143
    %v145 = vlaneseq
    %v146 = vshrl.u32 %v145, 7
    %v147 = vsub.s32 1, %v146
    %v148 = vrot.slane %v59, %v147
    %151 = vmatprep.subr.bf16.mxu0 %v109
    %152 = vmatpush1.bf16.msra.mxu0 %v108
    %153 = vmatprep.subr.bf16.mxu0 %v111
    %154 = vmatpush1.bf16.msra.mxu0 %v110
    %155 = vmatprep.subr.bf16.mxu0 %v113
    %156 = vmatpush1.bf16.msra.mxu0 %v112
    %157 = vmatprep.subr.bf16.mxu0 %v115
    %158 = vmatpush1.bf16.msra.mxu0 %v114
    %159 = vmatprep.subr.bf16.mxu0 %v117
    %160 = vmatpush1.bf16.msra.mxu0 %v116
    %161 = vmatprep.subr.bf16.mxu0 %v119
    %162 = vmatpush1.bf16.msra.mxu0 %v118
    %163 = vmatprep.subr.bf16.mxu0 %v121
    %164 = vmatpush1.bf16.msra.mxu0 %v120
    %165 = vmatprep.subr.bf16.mxu0 %v123
    %166 = vmatpush1.bf16.msra.mxu0 %v122
    %167 = vmatprep.subr.bf16.mxu0 0
    %168 = vmatpush1.bf16.msra.mxu0 0
    %169 = vmatprep.subr.bf16.mxu0 0
    %170 = vmatpush1.bf16.msra.mxu0 0
    %171 = vmatprep.subr.bf16.mxu0 0
    %172 = vmatpush1.bf16.msra.mxu0 0
    %173 = vmatprep.subr.bf16.mxu0 0
    %174 = vmatpush1.bf16.msra.mxu0 0
    %175 = vmatprep.subr.bf16.mxu0 0
    %176 = vmatpush1.bf16.msra.mxu0 0
    %177 = vmatprep.subr.bf16.mxu0 0
    %178 = vmatpush1.bf16.msra.mxu0 0
    %179 = vmatprep.subr.bf16.mxu0 0
    %180 = vmatpush1.bf16.msra.mxu0 0
    %181 = vmatprep.subr.bf16.mxu0 0
    %182 = vmatpush1.bf16.msra.mxu0 0
    %183 = vmatprep.mubr.bf16.mxu0 0
    %184 = vmatmul.mubr.bf16.gmra.mrb[0].mxu0 %v42
    %v185 = vpop.f32.mrb[0].mxu0
    %v186 = vadd.f32 %v144, %v185
    %v187 = vpop.f32.mrb[0].mxu0
    %v188 = vadd.f32 %v148, %v187
    %v189 = vpop.f32.mrb[0].mxu0
    %v190 = vpop.f32.mrb[0].mxu0
    %191 = vdwg.mxu0
    %v194 = vcombine.low %v186, %v188
    %v196 = vunpack.c.l.s4 1966171168
    %v197 = vunpack.c.0.s8 %v196
    %v198 = vlaneseq
    %v199 = vshrl.u32 %v198, 7
    %v200 = vsub.s32 %v197, %v199
    %v201 = vrot.slane %v194, %v200
    %v203 = vunpack.c.l.s4 1966171168
    %v204 = vunpack.c.0.s8 %v203
    %v205 = vlaneseq
    %v206 = vshrl.u32 %v205, 7
    %v207 = vsub.s32 %v204, %v206
    %v208 = vrot.slane %v201, %v207
    %v210 = vlaneseq
    %vm211 = vcmp.ge.s32.totalorder %v210, 0
    %vm212 = vcmp.lt.s32.totalorder %v210, 256
    %vm213 = vmand %vm211, %vm212
    %214 = vst.msk [vmem:[#allocation7] sm:$0x3] %vm213, %v208
    // Predicated region
    $region22: #{tpu_custom_call.1} parent=1 // pred_check
      _
    $region23: #{tpu_custom_call.1} parent=1 // pred_check_branch
      %216 = sbr.rel (0) target = $region25
    $region24: #{tpu_custom_call.1} parent=1 // pred_region
      %s218 = ssub.s32 32, 32
      %219 = vsyncadd [#allocation4], %s218
      %s221 = sshll.u32 [#allocation7], 4
      %s222 = int_to_ptr.vmem [resolvable:$true] %s221
      %224 = dma.vmem_to_hbm [thread:$0]  %s222, 32, %s3, [#allocation4]
    $region25: #{tpu_custom_call.1} parent=1 // pred_fallthru
      _
    // Predicated region
    $region26: #{tpu_custom_call.1} parent=1 // pred_check
      _
    $region27: #{tpu_custom_call.1} parent=1 // pred_check_branch
      %226 = sbr.rel (0) target = $region29
    $region28: #{tpu_custom_call.1} parent=1 // pred_region
      %227 = dma.done [#allocation4], 32
    $region29: #{tpu_custom_call.1} parent=1 // pred_fallthru
      _
    %228 = vsyncpa [#allocation3], 1
    %229 = vsyncpa [#allocation6], 1
    %230 = vsyncpa [#allocation4], 1

</llo_original>
